<compile_context>
chip_gen: v7x
topology: tpu7x:2x2x1
jax: 0.10.0
libtpu: 0.0.40
codegen_flags: <defaults>
</compile_context>

<pallas_src>
import functools

import jax
import jax.numpy as jnp
from jax.experimental import pallas as pl
from jax.experimental.pallas import tpu as pltpu

MARGIN = 0.5
_COS_EPS = 1e-8                     # torch cosine_similarity default eps
_COS_EPS2 = _COS_EPS * _COS_EPS

# Per-chunk partial-sum output: one lane-dense (8,128) f32 block per chunk,
# written exactly once (on the chunk's last inner step).
_OUT_SUB, _OUT_LANE = 8, 128


def _cdiv(a, b):
    return -(-a // b)


def _loss_tile_kernel(a_ref, b_ref, lbl_ref, out_ref, acc_ref, *,
                      tile_b, inner_tiles, batch, margin):
    c = pl.program_id(0)            # batch chunk ("parallel" -> one per TC)
    i = pl.program_id(1)            # inner tile  ("arbitrary" -> accumulation)

    @pl.when(i == 0)
    def _init():
        acc_ref[...] = jnp.zeros_like(acc_ref)

    a = a_ref[...].astype(jnp.float32)          # (tile_b, D)
    b = b_ref[...].astype(jnp.float32)          # (tile_b, D)
    lbl = lbl_ref[...].astype(jnp.float32)      # (tile_b, 1)

    dot = jnp.sum(a * b, axis=-1, keepdims=True)     # (tile_b, 1)
    na2 = jnp.sum(a * a, axis=-1, keepdims=True)
    nb2 = jnp.sum(b * b, axis=-1, keepdims=True)
    # 1 / max(||x||, eps) == rsqrt(max(||x||^2, eps^2))  (eps > 0) -> EUP slot.
    inv = (jax.lax.rsqrt(jnp.maximum(na2, _COS_EPS2)) *
           jax.lax.rsqrt(jnp.maximum(nb2, _COS_EPS2)))
    cos = dot * inv

    d = 1.0 - cos                    # COSINE_DISTANCE
    sim = jnp.exp(-d)                # kernel_fn := exp(-d)  (RBF)
    neg = jnp.maximum(margin - sim, 0.0)
    losses = 0.5 * (lbl * d * d + (1.0 - lbl) * neg * neg)   # (tile_b, 1)

    # Mask rows past the real batch (ragged last block: clipped DMA leaves
    # stale/garbage rows; phantom clamped blocks: whole block out of range).
    # MUST stay a select (jnp.where), not a multiply: garbage may be NaN/Inf.
    row0 = (c * inner_tiles + i) * tile_b       # UNclamped global row id
    rows = row0 + jax.lax.broadcasted_iota(jnp.int32, (tile_b, 1), 0)
    losses = jnp.where(rows < batch, losses, 0.0)

    # Deferred reduction: per-row running sum only (no per-step XLU reduce).
    acc_ref[...] += losses                                    # (tile_b, 1)

    @pl.when(i == inner_tiles - 1)
    def _finalize():
        out_ref[...] = jnp.broadcast_to(jnp.sum(acc_ref[...]), out_ref.shape)


def _chip_config():
    """(num_tensorcores, vmem_limit_bytes, target_bytes_per_input_tile)."""
    kind = ""
    try:
        kind = jax.devices()[0].device_kind.lower()
    except Exception:
        pass
    if "v7" in kind:
        # 64 MiB VMEM per TC: smaller tiles, tighter limit; 2 TCs/chip.
        n_tc, vmem_limit, target = 2, 52 << 20, 4 << 20
    elif ("v4" in kind) or ("v5p" in kind):
        n_tc, vmem_limit, target = 2, 100 << 20, 8 << 20
    elif ("lite" in kind) or ("v5e" in kind) or ("v6e" in kind) or ("v6" in kind):
        n_tc, vmem_limit, target = 1, 100 << 20, 8 << 20
    else:
        # Unknown chip: conservative.
        n_tc, vmem_limit, target = 1, 48 << 20, 4 << 20
    try:
        cap = pltpu.get_tpu_info().vmem_capacity_bytes
        vmem_limit = min(vmem_limit, int(cap * 0.8))
    except Exception:
        pass
    return n_tc, vmem_limit, target


def _choose_tile_b(batch, d, itemsize, packing, target_tile_bytes, max_rows=4096):
    """Rows per input tile: ~target bytes per tile, multiple of the dtype's
    native sublane packing, capped at max_rows.  If the whole batch fits in one
    tile, use the exact batch (full-extent block -> no ragged tail at all)."""
    rows = target_tile_bytes // max(d * itemsize, 1)
    rows = int(max(packing, min(max_rows, rows)))
    rows = (rows // packing) * packing
    if rows >= batch:
        return batch
    return rows


def contrastive_loss(rep_anchor, rep_other, labels, *, margin=MARGIN,
                     tile_b=None, num_chunks=None):
    """rep_anchor, rep_other: (B, D) float (pass bf16 as-is to halve DMA bytes);
    labels: (B,) of {0, 1}. Returns the mean contrastive loss as an f32 scalar.
    Tip: keep D a multiple of 128 for dense lane loads (384/768/1024 are fine)."""
    B, D = rep_anchor.shape
    assert rep_other.shape == (B, D) and labels.shape == (B,)

    itemsize = jnp.dtype(rep_anchor.dtype).itemsize
    packing = 8 * max(1, 4 // itemsize)         # 8 f32 / 16 bf16 / 32 int8
    n_tc, vmem_limit, target_bytes = _chip_config()

    if tile_b is None:
        tile_b = _choose_tile_b(B, D, itemsize, packing, target_bytes)
    assert tile_b == B or tile_b % 8 == 0, "tile_b must be a multiple of 8 (or == B)"

    num_tiles = _cdiv(B, tile_b)
    if num_chunks is None:
        num_chunks = n_tc if num_tiles >= 2 else 1
    num_chunks = max(1, min(num_chunks, num_tiles))
    inner_tiles = _cdiv(num_tiles, num_chunks)

    lbl2d = labels.astype(jnp.float32).reshape(B, 1)

    kernel = functools.partial(_loss_tile_kernel, tile_b=tile_b,
                               inner_tiles=inner_tiles, batch=B, margin=margin)

    last_block = num_tiles - 1

    def row_map(c, i):
        # Clamp so any phantom step (num_chunks*inner_tiles > num_tiles) re-reads
        # the last real block in-bounds; its rows are fully masked in-kernel.
        return (jnp.minimum(c * inner_tiles + i, last_block), 0)

    partials = pl.pallas_call(
        kernel,
        out_shape=jax.ShapeDtypeStruct((num_chunks * _OUT_SUB, _OUT_LANE),
                                       jnp.float32),
        grid_spec=pltpu.PrefetchScalarGridSpec(
            num_scalar_prefetch=0,
            grid=(num_chunks, inner_tiles),
            in_specs=[
                pl.BlockSpec((tile_b, D), row_map),
                pl.BlockSpec((tile_b, D), row_map),
                pl.BlockSpec((tile_b, 1), row_map),
            ],
            out_specs=pl.BlockSpec((_OUT_SUB, _OUT_LANE), lambda c, i: (c, 0)),
            scratch_shapes=[pltpu.VMEM((tile_b, 1), jnp.float32)],
        ),
        compiler_params=pltpu.CompilerParams(
            dimension_semantics=("parallel", "arbitrary"),
            vmem_limit_bytes=int(vmem_limit)),
    )(rep_anchor, rep_other, lbl2d)

    per_chunk = partials.reshape(num_chunks, _OUT_SUB, _OUT_LANE)[:, 0, 0]
    return jnp.sum(per_chunk) / B          # mean over the GLOBAL batch


def _reference_loss(rep_anchor, rep_other, labels, margin=MARGIN):
    a = rep_anchor.astype(jnp.float32)
    b = rep_other.astype(jnp.float32)
    lbl = labels.astype(jnp.float32)
    dot = jnp.sum(a * b, axis=-1)
    na = jnp.sqrt(jnp.sum(a * a, axis=-1))
    nb = jnp.sqrt(jnp.sum(b * b, axis=-1))
    cos = dot / (jnp.maximum(na, _COS_EPS) * jnp.maximum(nb, _COS_EPS))
    d = 1.0 - cos
    sim = jnp.exp(-d)
    neg = jnp.maximum(margin - sim, 0.0)
    losses = 0.5 * (lbl * d * d + (1.0 - lbl) * neg * neg)
    return jnp.mean(losses)


if __name__ == "__main__":
    key = jax.random.PRNGKey(0)
    k1, k2, k3, k4, k5, k6 = jax.random.split(key, 6)

    # Small batch of sentence-embedding pairs (D multiple of 128 -> dense lanes).
    B, D = 20, 256
    rep_anchor = jax.random.normal(k1, (B, D), dtype=jnp.float32)
    rep_other = jax.random.normal(k2, (B, D), dtype=jnp.float32)
    labels = jax.random.bernoulli(k3, 0.5, (B,)).astype(jnp.int32)
    ref = _reference_loss(rep_anchor, rep_other, labels)

    # Auto-tiled path: single full-extent block (no padding, no ragged tail).
    loss_auto = contrastive_loss(rep_anchor, rep_other, labels)
    jax.block_until_ready(loss_auto)
    assert jnp.allclose(loss_auto, ref, atol=1e-5, rtol=1e-5), (loss_auto, ref)

    # Forced multi-tile, 2-chunk path: ragged last block (4 valid rows), one
    # clamped phantom step on chunk 1, per-chunk partial sums, tail masking.
    loss_tiled = contrastive_loss(rep_anchor, rep_other, labels,
                                  tile_b=8, num_chunks=2)
    jax.block_until_ready(loss_tiled)
    assert jnp.allclose(loss_tiled, ref, atol=1e-5, rtol=1e-5), (loss_tiled, ref)

    # Medium case: several inner tiles per chunk + ragged tail (530 = 4*128+18),
    # exercising accumulation across steps and the clamped phantom block.
    B2, D2 = 530, 384
    a2 = jax.random.normal(k4, (B2, D2), dtype=jnp.float32)
    b2 = jax.random.normal(k5, (B2, D2), dtype=jnp.float32)
    l2 = jax.random.bernoulli(k6, 0.5, (B2,)).astype(jnp.int32)
    ref2 = _reference_loss(a2, b2, l2)
    loss_med = contrastive_loss(a2, b2, l2, tile_b=128, num_chunks=2)
    jax.block_until_ready(loss_med)
    assert jnp.allclose(loss_med, ref2, atol=1e-5, rtol=1e-5), (loss_med, ref2)

    print("KERNEL_OK")
</pallas_src>

<mosaic_0001>
module attributes {stable_mosaic.version = 11 : i64} {
  func.func @_loss_tile_kernel(%arg0: i32, %arg1: i32, %arg2: memref<20x256xf32, #tpu.memory_space<vmem>>, %arg3: memref<20x256xf32, #tpu.memory_space<vmem>>, %arg4: memref<20x1xf32, #tpu.memory_space<vmem>>, %arg5: memref<8x128xf32, #tpu.memory_space<vmem>>, %arg6: memref<20x1xf32, #tpu.memory_space<vmem>>) attributes {dimension_semantics = [#tpu.dimension_semantics<parallel>, #tpu.dimension_semantics<arbitrary>], iteration_bounds = array<i64: 1, 1>, scalar_prefetch = 0 : i64, scratch_operands = 1 : i64, tpu.core_type = #tpu.core_type<tc>, window_params = [{transform_indices = @transform_0, window_bounds = array<i64: 20, 256>}, {transform_indices = @transform_1, window_bounds = array<i64: 20, 256>}, {transform_indices = @transform_2, window_bounds = array<i64: 20, 1>}, {transform_indices = @transform_3, window_bounds = array<i64: 8, 128>}]} {
    %c0_i32 = arith.constant 0 : i32
    %0 = arith.cmpi eq, %arg1, %c0_i32 : i32
    %1 = arith.extui %0 : i1 to i32
    %c0_i32_0 = arith.constant 0 : i32
    %2 = arith.cmpi ne, %1, %c0_i32_0 : i32
    scf.if %2 {
      %cst_24 = arith.constant 0.000000e+00 : f32
      %57 = vector.broadcast %cst_24 : f32 to vector<20x1xf32>
      %c0_25 = arith.constant 0 : index
      %c0_26 = arith.constant 0 : index
      %58 = vector.load %arg6[%c0_25, %c0_26] : memref<20x1xf32, #tpu.memory_space<vmem>>, vector<20x1xf32>
      tpu.vector_store %arg6[%c0_25, %c0_26], %57 {strides = array<i32>} : memref<20x1xf32, #tpu.memory_space<vmem>>, vector<20x1xf32>,
    } else {
    }
    %c0 = arith.constant 0 : index
    %c0_1 = arith.constant 0 : index
    %3 = vector.load %arg2[%c0, %c0_1] : memref<20x256xf32, #tpu.memory_space<vmem>>, vector<20x256xf32>
    %c0_2 = arith.constant 0 : index
    %c0_3 = arith.constant 0 : index
    %4 = vector.load %arg3[%c0_2, %c0_3] : memref<20x256xf32, #tpu.memory_space<vmem>>, vector<20x256xf32>
    %c0_4 = arith.constant 0 : index
    %c0_5 = arith.constant 0 : index
    %5 = vector.load %arg4[%c0_4, %c0_5] : memref<20x1xf32, #tpu.memory_space<vmem>>, vector<20x1xf32>
    %6 = arith.mulf %3, %4 : vector<20x256xf32>
    %cst = arith.constant dense<0.000000e+00> : vector<20xf32>
    %7 = vector.multi_reduction <add>, %6, %cst [1] : vector<20x256xf32> to vector<20xf32>
    %8 = vector.shape_cast %7 : vector<20xf32> to vector<20x1xf32>
    %9 = arith.mulf %3, %3 : vector<20x256xf32>
    %cst_6 = arith.constant dense<0.000000e+00> : vector<20xf32>
    %10 = vector.multi_reduction <add>, %9, %cst_6 [1] : vector<20x256xf32> to vector<20xf32>
    %11 = vector.shape_cast %10 : vector<20xf32> to vector<20x1xf32>
    %12 = arith.mulf %4, %4 : vector<20x256xf32>
    %cst_7 = arith.constant dense<0.000000e+00> : vector<20xf32>
    %13 = vector.multi_reduction <add>, %12, %cst_7 [1] : vector<20x256xf32> to vector<20xf32>
    %14 = vector.shape_cast %13 : vector<20xf32> to vector<20x1xf32>
    %cst_8 = arith.constant 1.000000e-16 : f32
    %15 = vector.broadcast %cst_8 : f32 to vector<20x1xf32>
    %16 = arith.maximumf %11, %15 : vector<20x1xf32>
    %17 = math.rsqrt %16 : vector<20x1xf32>
    %cst_9 = arith.constant 1.000000e-16 : f32
    %18 = vector.broadcast %cst_9 : f32 to vector<20x1xf32>
    %19 = arith.maximumf %14, %18 : vector<20x1xf32>
    %20 = math.rsqrt %19 : vector<20x1xf32>
    %21 = arith.mulf %17, %20 : vector<20x1xf32>
    %22 = arith.mulf %8, %21 : vector<20x1xf32>
    %cst_10 = arith.constant 1.000000e+00 : f32
    %23 = vector.broadcast %cst_10 : f32 to vector<20x1xf32>
    %24 = arith.subf %23, %22 : vector<20x1xf32>
    %cst_11 = arith.constant 0.000000e+00 : f32
    %25 = vector.broadcast %cst_11 : f32 to vector<20x1xf32>
    %26 = arith.subf %25, %24 : vector<20x1xf32>
    %27 = math.exp %26 : vector<20x1xf32>
    %cst_12 = arith.constant 5.000000e-01 : f32
    %28 = vector.broadcast %cst_12 : f32 to vector<20x1xf32>
    %29 = arith.subf %28, %27 : vector<20x1xf32>
    %cst_13 = arith.constant 0.000000e+00 : f32
    %30 = vector.broadcast %cst_13 : f32 to vector<20x1xf32>
    %31 = arith.maximumf %29, %30 : vector<20x1xf32>
    %32 = arith.mulf %5, %24 : vector<20x1xf32>
    %33 = arith.mulf %32, %24 : vector<20x1xf32>
    %cst_14 = arith.constant 1.000000e+00 : f32
    %34 = vector.broadcast %cst_14 : f32 to vector<20x1xf32>
    %35 = arith.subf %34, %5 : vector<20x1xf32>
    %36 = arith.mulf %35, %31 : vector<20x1xf32>
    %37 = arith.mulf %36, %31 : vector<20x1xf32>
    %38 = arith.addf %33, %37 : vector<20x1xf32>
    %cst_15 = arith.constant 5.000000e-01 : f32
    %39 = vector.broadcast %cst_15 : f32 to vector<20x1xf32>
    %40 = arith.mulf %39, %38 : vector<20x1xf32>
    %c1_i32 = arith.constant 1 : i32
    %41 = arith.muli %arg0, %c1_i32 : i32
    %42 = arith.addi %41, %arg1 : i32
    %c20_i32 = arith.constant 20 : i32
    %43 = arith.muli %42, %c20_i32 : i32
    %44 = tpu.iota {dimensions = array<i32: 0>} : vector<20x1xi32>
    %45 = vector.broadcast %43 : i32 to vector<20x1xi32>
    %46 = arith.addi %45, %44 : vector<20x1xi32>
    %c20_i32_16 = arith.constant 20 : i32
    %47 = vector.broadcast %c20_i32_16 : i32 to vector<20x1xi32>
    %48 = arith.cmpi slt, %46, %47 : vector<20x1xi32>
    %cst_17 = arith.constant 0.000000e+00 : f32
    %49 = vector.broadcast %cst_17 : f32 to vector<20x1xf32>
    %50 = arith.select %48, %40, %49 : vector<20x1xi1>, vector<20x1xf32>
    %c0_18 = arith.constant 0 : index
    %c0_19 = arith.constant 0 : index
    %51 = vector.load %arg6[%c0_18, %c0_19] : memref<20x1xf32, #tpu.memory_space<vmem>>, vector<20x1xf32>
    %52 = arith.addf %51, %50 : vector<20x1xf32>
    %c0_20 = arith.constant 0 : index
    %c0_21 = arith.constant 0 : index
    %53 = vector.load %arg6[%c0_20, %c0_21] : memref<20x1xf32, #tpu.memory_space<vmem>>, vector<20x1xf32>
    tpu.vector_store %arg6[%c0_20, %c0_21], %52 {strides = array<i32>} : memref<20x1xf32, #tpu.memory_space<vmem>>, vector<20x1xf32>,
    %c0_i32_22 = arith.constant 0 : i32
    %54 = arith.cmpi eq, %arg1, %c0_i32_22 : i32
    %55 = arith.extui %54 : i1 to i32
    %c0_i32_23 = arith.constant 0 : i32
    %56 = arith.cmpi ne, %55, %c0_i32_23 : i32
    scf.if %56 {
      %c0_24 = arith.constant 0 : index
      %c0_25 = arith.constant 0 : index
      %57 = vector.load %arg6[%c0_24, %c0_25] : memref<20x1xf32, #tpu.memory_space<vmem>>, vector<20x1xf32>
      %58 = vector.shape_cast %57 : vector<20x1xf32> to vector<1x20x1xf32>
      %cst_26 = arith.constant dense<0.000000e+00> : vector<1xf32>
      %59 = vector.multi_reduction <add>, %58, %cst_26 [1, 2] : vector<1x20x1xf32> to vector<1xf32>
      %60 = vector.shape_cast %59 : vector<1xf32> to vector<1x1x1xf32>
      %61 = vector.extract %60[0, 0, 0] : f32 from vector<1x1x1xf32>
      %62 = vector.broadcast %61 : f32 to vector<8x128xf32>
      %c0_27 = arith.constant 0 : index
      %c0_28 = arith.constant 0 : index
      %63 = vector.load %arg5[%c0_27, %c0_28] : memref<8x128xf32, #tpu.memory_space<vmem>>, vector<8x128xf32>
      tpu.vector_store %arg5[%c0_27, %c0_28], %62 {strides = array<i32>} : memref<8x128xf32, #tpu.memory_space<vmem>>, vector<8x128xf32>,
    } else {
    }
    return
  }
  func.func @transform_0(%arg0: i32, %arg1: i32) -> (i32, i32) {
    %c1_i32 = arith.constant 1 : i32
    %0 = arith.muli %arg0, %c1_i32 : i32
    %1 = arith.addi %0, %arg1 : i32
    %c0_i32 = arith.constant 0 : i32
    %2 = arith.minsi %1, %c0_i32 : i32
    %c0_i32_0 = arith.constant 0 : i32
    %c0_i32_1 = arith.constant 0 : i32
    return %2, %c0_i32_0 : i32, i32
  }
  func.func @transform_1(%arg0: i32, %arg1: i32) -> (i32, i32) {
    %c1_i32 = arith.constant 1 : i32
    %0 = arith.muli %arg0, %c1_i32 : i32
    %1 = arith.addi %0, %arg1 : i32
    %c0_i32 = arith.constant 0 : i32
    %2 = arith.minsi %1, %c0_i32 : i32
    %c0_i32_0 = arith.constant 0 : i32
    %c0_i32_1 = arith.constant 0 : i32
    return %2, %c0_i32_0 : i32, i32
  }
  func.func @transform_2(%arg0: i32, %arg1: i32) -> (i32, i32) {
    %c1_i32 = arith.constant 1 : i32
    %0 = arith.muli %arg0, %c1_i32 : i32
    %1 = arith.addi %0, %arg1 : i32
    %c0_i32 = arith.constant 0 : i32
    %2 = arith.minsi %1, %c0_i32 : i32
    %c0_i32_0 = arith.constant 0 : i32
    %c0_i32_1 = arith.constant 0 : i32
    return %2, %c0_i32_0 : i32, i32
  }
  func.func @transform_3(%arg0: i32, %arg1: i32) -> (i32, i32) {
    %c0_i32 = arith.constant 0 : i32
    %c0_i32_0 = arith.constant 0 : i32
    return %arg0, %c0_i32 : i32, i32
  }
}

</mosaic_0001>

<llo_original>
// kernel: tpu_custom_call.1
$region0: #{tpu_custom_call.1}
  #allocation0 [shape = 'u32[]', space=smem, size = 0x4, offset = 0x4, fixed_abs, tag = 'smem constant byte address 0x4 - core index']
  #allocation1 [shape = 'u32[144,128]{1,0:T(1,128)}', space=vmem, size = 0x12000, scoped, tag = 'internal scratch']
  #allocation2 [shape = 'f32[20,1]{1,0:T(8,128)}', space=vmem, size = 0x3000, scoped, tag = 'scratch operand']
  %s0 = inlined_call_operand.hbm [shape: f32[20,256], index: 0, kind: input, shape index: {}]
  %s1 = inlined_call_operand.hbm [shape: f32[20,256], index: 1, kind: input, shape index: {}]
  %s2 = inlined_call_operand.vmem [shape: f32[20,1], index: 2, kind: input, shape index: {}]
  %s3 = inlined_call_operand.hbm [shape: f32[8,128], index: 3, kind: output, shape index: {}]
  %s4 = sld [smem:[#allocation0]]
  $region38: #{tpu_custom_call.1} parent=0
    _
  %s6 = ssub.s32 1, %s4
  %s7 = scalar_select 0, %s6, %s4
  $region1: #{tpu_custom_call.1} parent=0
    #allocation3 [shape = 'u8[24576]{0}', space=vmem, size = 0x6000, scoped, tag = 'input window, operand 0, single buffered']
    #allocation4 [shape = 's32[1]{0}', space=sflag, size = 0x4, scoped, tag = 'scoped memory for tpu_custom_call.1']
    #allocation5 [shape = 's32[1]{0}', space=sflag, size = 0x4, scoped, tag = 'scoped memory for tpu_custom_call.1']
    #allocation6 [shape = 'u8[24576]{0}', space=vmem, size = 0x6000, scoped, tag = 'input window, operand 1, single buffered']
    #allocation7 [shape = 's32[1]{0}', space=sflag, size = 0x4, scoped, tag = 'scoped memory for tpu_custom_call.1']
    #allocation8 [shape = 'u8[4096]{0}', space=vmem, size = 0x1000, scoped, tag = 'output window, operand 0, single buffered']
    %8 = vsyncpa [#allocation4], 0
    %9 = vsyncpa [#allocation7], 0
    %10 = vsyncpa [#allocation5], 0
    // Predicated region
    $region2: #{tpu_custom_call.1} parent=1 // pred_check
      _
    $region3: #{tpu_custom_call.1} parent=1 // pred_check_branch
      %12 = sbr.rel (0) target = $region5
    $region4: #{tpu_custom_call.1} parent=1 // pred_region
      %s13 = sadd.s32 0, 0
      %p14 = scmp.lt.s32.totalorder %s13, 0
      %s15 = scalar_select %p14, %s13, 0
      %s16 = smul.u32 3, %s15
      %s18 = ssub.s32 768, 768
      %19 = vsyncadd [#allocation4], %s18
      %s20 = smul.addr %s16, 2
      %s21 = smul.addr %s20, 128
      %s22 = scalar_lea.hbm %s0, %s21
      %s23 = sshll.u32 [#allocation3], 4
      %s24 = int_to_ptr.vmem [resolvable:$true] %s23
      %29 = dma.hbm_to_vmem [thread:$0]  %s22, 768, %s24, [#allocation4], 256, 256, 16
    $region5: #{tpu_custom_call.1} parent=1 // pred_fallthru
      _
    // Predicated region
    $region6: #{tpu_custom_call.1} parent=1 // pred_check
      _
    $region7: #{tpu_custom_call.1} parent=1 // pred_check_branch
      %31 = sbr.rel (0) target = $region9
    $region8: #{tpu_custom_call.1} parent=1 // pred_region
      %s32 = sadd.s32 0, 0
      %p33 = scmp.lt.s32.totalorder %s32, 0
      %s34 = scalar_select %p33, %s32, 0
      %s35 = smul.u32 3, %s34
      %s37 = ssub.s32 768, 768
      %38 = vsyncadd [#allocation7], %s37
      %s39 = smul.addr %s35, 2
      %s40 = smul.addr %s39, 128
      %s41 = scalar_lea.hbm %s1, %s40
      %s42 = sshll.u32 [#allocation6], 4
      %s43 = int_to_ptr.vmem [resolvable:$true] %s42
      %48 = dma.hbm_to_vmem [thread:$0]  %s41, 768, %s43, [#allocation7], 256, 256, 16
    $region9: #{tpu_custom_call.1} parent=1 // pred_fallthru
      _
    // Predicated region
    $region10: #{tpu_custom_call.1} parent=1 // pred_check
      _
    $region11: #{tpu_custom_call.1} parent=1 // pred_check_branch
      %50 = sbr.rel (0) target = $region13
    $region12: #{tpu_custom_call.1} parent=1 // pred_region
      %s51 = sadd.s32 0, 0
      %p52 = scmp.lt.s32.totalorder %s51, 0
      %s53 = scalar_select %p52, %s51, 0
      %s54 = smul.u32 3, %s53
      %p55 = scmp.lt.s32.totalorder %s54, 2
      %s56 = scalar_select %p55, %s54, 2
      %s57 = smul.addr %s56, 8
      %s58 = scalar_lea.vmem %s2, %s57
      %s59 = sadd.s32 0, 0
      %p60 = scmp.lt.s32.totalorder %s59, 0
      %s61 = scalar_select %p60, %s59, 0
      %s62 = smul.u32 3, %s61
    $region13: #{tpu_custom_call.1} parent=1 // pred_fallthru
      _
    // Predicated region
    $region14: #{tpu_custom_call.1} parent=1 // pred_check
      _
    $region15: #{tpu_custom_call.1} parent=1 // pred_check_branch
      %64 = sbr.rel (0) target = $region17
    $region16: #{tpu_custom_call.1} parent=1 // pred_region
      %65 = dma.done [#allocation4], 768
    $region17: #{tpu_custom_call.1} parent=1 // pred_fallthru
      _
    // Predicated region
    $region18: #{tpu_custom_call.1} parent=1 // pred_check
      _
    $region19: #{tpu_custom_call.1} parent=1 // pred_check_branch
      %67 = sbr.rel (0) target = $region21
    $region20: #{tpu_custom_call.1} parent=1 // pred_region
      %68 = dma.done [#allocation7], 768
    $region21: #{tpu_custom_call.1} parent=1 // pred_fallthru
      _
    %s69 = sadd.s32 0, 0
    %p70 = scmp.lt.s32.totalorder %s69, 0
    %s71 = scalar_select %p70, %s69, 0
    %s72 = smul.u32 3, %s71
    %p73 = scmp.lt.s32.totalorder %s72, 2
    %s74 = scalar_select %p73, %s72, 2
    %s75 = smul.addr %s74, 8
    %s76 = scalar_lea.vmem %s2, %s75
    %s77 = sadd.s32 0, 0
    %p78 = scmp.lt.s32.totalorder %s77, 0
    %s79 = scalar_select %p78, %s77, 0
    %s80 = smul.u32 3, %s79
    %s81 = sadd.s32 0, 0
    %p82 = scmp.lt.s32.totalorder %s81, 0
    %s83 = scalar_select %p82, %s81, 0
    %s84 = smul.u32 3, %s83
    %s85 = sadd.s32 0, 0
    %p86 = scmp.lt.s32.totalorder %s85, 0
    %s87 = scalar_select %p86, %s85, 0
    %s88 = smul.u32 3, %s87
    %p89 = scmp.lt.s32.totalorder %s88, 2
    %s90 = scalar_select %p89, %s88, 2
    %s91 = smul.addr %s90, 8
    %s92 = scalar_lea.vmem %s2, %s91
    %s93 = sadd.s32 0, 0
    %p94 = scmp.lt.s32.totalorder %s93, 0
    %s95 = scalar_select %p94, %s93, 0
    %s96 = smul.u32 3, %s95
    %p97 = scmp.eq.s32.totalorder 0, 0
    // Predicated region
    $region22: #{tpu_custom_call.1} parent=1 // pred_check
      %p98 = pneg %p97
    $region23: #{tpu_custom_call.1} parent=1 // pred_check_branch
      %100 = sbr.rel (%p98) target = $region25
    $region24: #{tpu_custom_call.1} parent=1 // pred_region
      %vm101 = vcmask 7168
      %102 = vst.msk [vmem:[#allocation2] sm:$0xff] %vm101, 0.0
      %103 = vst.msk [vmem:[#allocation2 + $0x8] sm:$0xff] %vm101, 0.0
      %vm104 = vcmask 3072
      %105 = vst.msk [vmem:[#allocation2 + $0x10] sm:$0xf] %vm104, 0.0
    $region25: #{tpu_custom_call.1} parent=1 // pred_fallthru
      _
    %v106 = vld [vmem:[#allocation3] sm:$0xff]
    %v107 = vld [vmem:[#allocation3 + $0x8] sm:$0xff]
    %v108 = vld [vmem:[#allocation3 + $0x10] sm:$0xff]
    %v109 = vld [vmem:[#allocation3 + $0x18] sm:$0xff]
    %v110 = vld [vmem:[#allocation3 + $0x20] sm:$0xf]
    %v111 = vld [vmem:[#allocation3 + $0x28] sm:$0xf]
    %v112 = vld [vmem:[#allocation6] sm:$0xff]
    %v113 = vld [vmem:[#allocation6 + $0x8] sm:$0xff]
    %v114 = vld [vmem:[#allocation6 + $0x10] sm:$0xff]
    %v115 = vld [vmem:[#allocation6 + $0x18] sm:$0xff]
    %v116 = vld [vmem:[#allocation6 + $0x20] sm:$0xf]
    %v117 = vld [vmem:[#allocation6 + $0x28] sm:$0xf]
    %v118 = vld [vmem:[%s92] sm:$0xff]
    %v119 = vld [vmem:[%s92 + $0x8] sm:$0xff]
    %v120 = vld [vmem:[%s92 + $0x10] sm:$0xf]
    %v121 = vmul.f32 %v106, %v112
    %v122 = vmul.f32 %v107, %v113
    %v123 = vmul.f32 %v108, %v114
    %v124 = vmul.f32 %v109, %v115
    %v125 = vmul.f32 %v110, %v116
    %v126 = vmul.f32 %v111, %v117
    %v127 = vadd.f32 %v121, %v122
    %128 = vadd.xlane.f32.xlu0 %v127
    %v129 = vpop.xlane.xlu0 %128
    %v130 = vadd.f32 %v123, %v124
    %131 = vadd.xlane.f32.xlu0 %v130
    %v132 = vpop.xlane.xlu0 %131
    %vm133 = vcmask 1043456
    %v134 = vsel %vm133, %v125, 0.0
    %v135 = vsel %vm133, %v126, 0.0
    %v136 = vadd.f32 %v134, %v135
    %137 = vadd.xlane.f32.xlu0 %v136
    %v138 = vpop.xlane.xlu0 %137
    %v139 = vmul.f32 %v106, %v106
    %v140 = vmul.f32 %v107, %v107
    %v141 = vmul.f32 %v108, %v108
    %v142 = vmul.f32 %v109, %v109
    %v143 = vmul.f32 %v110, %v110
    %v144 = vmul.f32 %v111, %v111
    %v145 = vadd.f32 %v139, %v140
    %146 = vadd.xlane.f32.xlu0 %v145
    %v147 = vpop.xlane.xlu0 %146
    %v148 = vadd.f32 %v141, %v142
    %149 = vadd.xlane.f32.xlu0 %v148
    %v150 = vpop.xlane.xlu0 %149
    %v151 = vsel %vm133, %v143, 0.0
    %v152 = vsel %vm133, %v144, 0.0
    %v153 = vadd.f32 %v151, %v152
    %154 = vadd.xlane.f32.xlu0 %v153
    %v155 = vpop.xlane.xlu0 %154
    %v156 = vmul.f32 %v112, %v112
    %v157 = vmul.f32 %v113, %v113
    %v158 = vmul.f32 %v114, %v114
    %v159 = vmul.f32 %v115, %v115
    %v160 = vmul.f32 %v116, %v116
    %v161 = vmul.f32 %v117, %v117
    %v162 = vadd.f32 %v156, %v157
    %163 = vadd.xlane.f32.xlu0 %v162
    %v164 = vpop.xlane.xlu0 %163
    %v165 = vadd.f32 %v158, %v159
    %166 = vadd.xlane.f32.xlu0 %v165
    %v167 = vpop.xlane.xlu0 %166
    %v168 = vsel %vm133, %v160, 0.0
    %v169 = vsel %vm133, %v161, 0.0
    %v170 = vadd.f32 %v168, %v169
    %171 = vadd.xlane.f32.xlu0 %v170
    %v172 = vpop.xlane.xlu0 %171
    %v173 = vmax.f32 %v147, 1e-16
    %v174 = vmax.f32 %v150, 1e-16
    %v175 = vmax.f32 %v155, 1e-16
    %v176 = vrsqrt.pop %v173
    %v177 = vrsqrt.pop %v174
    %v178 = vrsqrt.pop %v175
    %v179 = vmax.f32 %v164, 1e-16
    %v180 = vmax.f32 %v167, 1e-16
    %v181 = vmax.f32 %v172, 1e-16
    %v182 = vrsqrt.pop %v179
    %v183 = vrsqrt.pop %v180
    %v184 = vrsqrt.pop %v181
    %v185 = vmul.f32 %v176, %v182
    %v186 = vmul.f32 %v177, %v183
    %v187 = vmul.f32 %v178, %v184
    %v188 = vmul.f32 %v129, %v185
    %v189 = vmul.f32 %v132, %v186
    %v190 = vmul.f32 %v138, %v187
    %v191 = vsub.f32 1.0, %v188
    %v192 = vsub.f32 1.0, %v189
    %v193 = vsub.f32 1.0, %v190
    %v194 = vsub.f32 0.0, %v191
    %v195 = vsub.f32 0.0, %v192
    %v196 = vsub.f32 0.0, %v193
    %v197 = vmul.f32 %v194, 1.442695
    %v198 = vpow.pop %v197
    %v199 = vmul.f32 %v195, 1.442695
    %v200 = vpow.pop %v199
    %v201 = vmul.f32 %v196, 1.442695
    %v202 = vpow.pop %v201
    %v203 = vsub.f32 0.5, %v198
    %v204 = vsub.f32 0.5, %v200
    %v205 = vsub.f32 0.5, %v202
    %v206 = vmax.f32 %v203, 0.0
    %v207 = vmax.f32 %v204, 0.0
    %v208 = vmax.f32 %v205, 0.0
    %v209 = vmul.f32 %v118, %v191
    %v210 = vmul.f32 %v119, %v192
    %v211 = vmul.f32 %v120, %v193
    %v212 = vmul.f32 %v209, %v191
    %v213 = vmul.f32 %v210, %v192
    %v214 = vmul.f32 %v211, %v193
    %v215 = vsub.f32 1.0, %v118
    %v216 = vsub.f32 1.0, %v119
    %v217 = vsub.f32 1.0, %v120
    %v218 = vmul.f32 %v215, %v206
    %v219 = vmul.f32 %v216, %v207
    %v220 = vmul.f32 %v217, %v208
    %v221 = vmul.f32 %v218, %v206
    %v222 = vmul.f32 %v219, %v207
    %v223 = vmul.f32 %v220, %v208
    %v224 = vadd.f32 %v212, %v221
    %v225 = vadd.f32 %v213, %v222
    %v226 = vadd.f32 %v214, %v223
    %v227 = vmul.f32 %v224, 0.5
    %v228 = vmul.f32 %v225, 0.5
    %v229 = vmul.f32 %v226, 0.5
    %s230 = sadd.s32 0, 0
    %s231 = smul.u32 %s230, 20
    %v232 = vlaneseq
    %v233 = vshrl.u32 %v232, 7
    %v234 = vadd.s32 %v233, 8
    %v235 = vadd.s32 %v233, 16
    %v236 = vstv %s231
    %v237 = vadd.s32 %v236, %v233
    %v238 = vadd.s32 %v236, %v234
    %v239 = vadd.s32 %v236, %v235
    %vm240 = vcmp.lt.s32.totalorder %v237, 20
    %vm241 = vcmp.lt.s32.totalorder %v238, 20
    %vm242 = vcmp.lt.s32.totalorder %v239, 20
    %v243 = vsel %vm240, %v227, 0.0
    %v244 = vsel %vm241, %v228, 0.0
    %v245 = vsel %vm242, %v229, 0.0
    %v246 = vld [vmem:[#allocation2] sm:$0xff]
    %v247 = vld [vmem:[#allocation2 + $0x8] sm:$0xff]
    %v248 = vld [vmem:[#allocation2 + $0x10] sm:$0xf]
    %v249 = vadd.f32 %v246, %v243
    %v250 = vadd.f32 %v247, %v244
    %v251 = vadd.f32 %v248, %v245
    %vm252 = vcmask 7168
    %253 = vst.msk [vmem:[#allocation2] sm:$0xff] %vm252, %v249
    %254 = vst.msk [vmem:[#allocation2 + $0x8] sm:$0xff] %vm252, %v250
    %vm255 = vcmask 3072
    %256 = vst.msk [vmem:[#allocation2 + $0x10] sm:$0xf] %vm255, %v251
    // Predicated region
    $region26: #{tpu_custom_call.1} parent=1 // pred_check
      %p257 = pneg %p97
    $region27: #{tpu_custom_call.1} parent=1 // pred_check_branch
      %259 = sbr.rel (%p257) target = $region29
    $region28: #{tpu_custom_call.1} parent=1 // pred_region
      %v260 = vld [vmem:[#allocation2] sm:$0xff]
      %v261 = vld [vmem:[#allocation2 + $0x8] sm:$0xff]
      %v262 = vld [vmem:[#allocation2 + $0x10] sm:$0xf]
      %v263 = vsel %vm252, %v260, 0.0
      %v264 = vsel %vm252, %v261, 0.0
      %v265 = vadd.f32 %v263, %v264
      %v266 = vsel %vm255, %v262, 0.0
      %v267 = vadd.f32 %v265, %v266
      %268 = vadd.xlane.f32.xlu0 %v267
      %v269 = vpop.xlane.xlu0 %268
      %v270 = vrot.slane %v269, 4
      %v271 = vadd.f32 %v269, %v270
      %v272 = vrot.slane %v271, 2
      %v273 = vadd.f32 %v271, %v272
      %v274 = vrot.slane %v273, 1
      %v275 = vadd.f32 %v273, %v274
      %s276 = vtos %v275
      %v277 = vstv %s276
      %278 = vst [vmem:[#allocation8] sm:$0xff] %v277
    $region29: #{tpu_custom_call.1} parent=1 // pred_fallthru
      _
    // Predicated region
    $region30: #{tpu_custom_call.1} parent=1 // pred_check
      _
    $region31: #{tpu_custom_call.1} parent=1 // pred_check_branch
      %280 = sbr.rel (0) target = $region33
    $region32: #{tpu_custom_call.1} parent=1 // pred_region
      %s282 = ssub.s32 128, 128
      %283 = vsyncadd [#allocation5], %s282
      %s285 = sshll.u32 [#allocation8], 4
      %s286 = int_to_ptr.vmem [resolvable:$true] %s285
      %288 = dma.vmem_to_hbm [thread:$0]  %s286, 128, %s3, [#allocation5]
    $region33: #{tpu_custom_call.1} parent=1 // pred_fallthru
      _
    // Predicated region
    $region34: #{tpu_custom_call.1} parent=1 // pred_check
      _
    $region35: #{tpu_custom_call.1} parent=1 // pred_check_branch
      %290 = sbr.rel (0) target = $region37
    $region36: #{tpu_custom_call.1} parent=1 // pred_region
      %291 = dma.done [#allocation5], 128
    $region37: #{tpu_custom_call.1} parent=1 // pred_fallthru
      _
    %292 = vsyncpa [#allocation4], 1
    %293 = vsyncpa [#allocation7], 1
    %294 = vsyncpa [#allocation5], 1

</llo_original>
